<compile_context>
chip_gen: v7x
topology: tpu7x:2x2x1
jax: 0.10.0
libtpu: 0.0.40
codegen_flags: <defaults>
</compile_context>

<pallas_src>
import functools

import jax
import jax.numpy as jnp
from jax.experimental import pallas as pl
from jax.experimental.pallas import tpu as pltpu

_SUBLANE = 8
_MAX_TB = 1024   # rows per batch tile; per-tile footprint ~0.7 MB << any chip's VMEM limit


def _round_up(x, m):
    return (x + m - 1) // m * m


def _qnet_kernel(obs_ref, act_ref, w1_ref, b1_ref, w2_ref, b2_ref, o_ref, *, obs_dim):
    """One batch tile, all nets fused.

    h = relu(obs @ W1[:obs_dim] + act @ W1[obs_dim:] + b1)   # (TB, num_nets*H) lane-dense
    o = h @ W2_blockdiag + b2                                # (TB, num_nets)
    """
    h = (jnp.dot(obs_ref[...], w1_ref[:obs_dim, :], preferred_element_type=jnp.float32)
         + jnp.dot(act_ref[...], w1_ref[obs_dim:, :], preferred_element_type=jnp.float32)
         + b1_ref[...])
    h = jnp.maximum(h, 0.0)                                   # ReLU on the VPU
    o_ref[...] = (jnp.dot(h, w2_ref[...], preferred_element_type=jnp.float32)
                  + b2_ref[...])


def init_params(key, input_dim, action_dim, hidden, num_nets):
    """Per-net parameters in the PyTorch Linear layout (deterministic synthetic init)."""
    d = input_dim + action_dim
    ks = jax.random.split(key, 4)
    lim1 = 1.0 / jnp.sqrt(d)
    lim2 = 1.0 / jnp.sqrt(hidden)
    return {
        "w1": jax.random.uniform(ks[0], (num_nets, d, hidden), jnp.float32, -lim1, lim1),
        "b1": jax.random.uniform(ks[1], (num_nets, 1, hidden), jnp.float32, -lim1, lim1),
        "w2": jax.random.uniform(ks[2], (num_nets, hidden, 1), jnp.float32, -lim2, lim2),
        "b2": jax.random.uniform(ks[3], (num_nets, 1, 1), jnp.float32, -lim2, lim2),
    }


def fuse_params(params, input_dim):
    """One-time conversion of per-net params into the fused lane-dense kernel layout."""
    w1, b1, w2, b2 = params["w1"], params["b1"], params["w2"], params["b2"]
    num_nets, d, hidden = w1.shape

    # Layer 1: (num_nets, D, H) -> single stacked (D, num_nets*H); hidden axis is lane-dense.
    w1_flat = jnp.transpose(w1, (1, 0, 2)).reshape(d, num_nets * hidden)
    b1_flat = b1.reshape(1, num_nets * hidden)

    # Layer 2: block-diagonal (num_nets*H, num_nets) so one dot lands every net's scalar
    # Q-value on its own output column (no 128-lane padding of the output).
    # NOTE: fine for small ensembles; for num_nets >~ 8 replace with a reshape(B, num_nets, H)
    # elementwise-multiply + sum over H to avoid O(num_nets^2 * H) mostly-zero MXU work.
    eye = jnp.eye(num_nets, dtype=jnp.float32)
    w2_blk = (w2[:, :, 0][:, :, None] * eye[:, None, :]).reshape(num_nets * hidden, num_nets)
    b2_row = b2[:, 0, 0][None, :]

    return {"w1": w1_flat, "b1": b1_flat, "w2": w2_blk, "b2": b2_row,
            "input_dim": input_dim, "num_nets": num_nets, "hidden": hidden}


@jax.jit
def _q_forward_impl(observation, action, w1, b1, w2, b2):
    b, obs_dim = observation.shape
    act_dim = action.shape[1]
    d, n_h = w1.shape
    num_nets = w2.shape[1]

    tb = min(_MAX_TB, _round_up(b, _SUBLANE))
    grid = (pl.cdiv(b, tb),)

    flops = 2 * b * d * n_h + 2 * b * n_h * num_nets
    bytes_accessed = 4 * (b * (obs_dim + act_dim + num_nets)
                          + d * n_h + n_h + n_h * num_nets + num_nets)

    kernel = functools.partial(_qnet_kernel, obs_dim=obs_dim)
    return pl.pallas_call(
        kernel,
        out_shape=jax.ShapeDtypeStruct((b, num_nets), jnp.float32),
        grid=grid,
        in_specs=[
            pl.BlockSpec((tb, obs_dim), lambda i: (i, 0)),     # batch-tiled, pipelined
            pl.BlockSpec((tb, act_dim), lambda i: (i, 0)),     # batch-tiled, pipelined
            pl.BlockSpec((d, n_h), lambda i: (0, 0)),          # VMEM-resident weights
            pl.BlockSpec((1, n_h), lambda i: (0, 0)),
            pl.BlockSpec((n_h, num_nets), lambda i: (0, 0)),
            pl.BlockSpec((1, num_nets), lambda i: (0, 0)),
        ],
        out_specs=pl.BlockSpec((tb, num_nets), lambda i: (i, 0)),
        compiler_params=pltpu.CompilerParams(
            dimension_semantics=("parallel",)),                # megacore sharding on v7x
        cost_estimate=pl.CostEstimate(flops=flops, transcendentals=0,
                                      bytes_accessed=bytes_accessed),
    )(observation, action, w1, b1, w2, b2)


def q_forward(observation, action, fused):
    """Pallas forward of QNetwork: (B, obs_dim), (B, act_dim) -> (B, num_nets)."""
    return _q_forward_impl(observation, action,
                           fused["w1"], fused["b1"], fused["w2"], fused["b2"])


def _reference(observation, action, params):
    """Pure-JAX reference matching the PyTorch module."""
    x = jnp.concatenate([observation, action], axis=1)
    outs = []
    for n in range(params["w1"].shape[0]):
        h = jnp.maximum(x @ params["w1"][n] + params["b1"][n], 0.0)
        outs.append(h @ params["w2"][n] + params["b2"][n])
    return jnp.concatenate(outs, axis=1)   # (B, num_nets)


if __name__ == "__main__":
    key = jax.random.PRNGKey(0)
    k_obs, k_act, k_param = jax.random.split(key, 3)

    batch = 4
    input_dim = 16
    action_dim = 6      # continuous action vector dimension
    hidden = 64
    num_nets = 2        # num_nets * hidden = 128 -> lane-dense hidden layer

    obs = jax.random.normal(k_obs, (batch, input_dim), jnp.float32)
    act = jax.random.normal(k_act, (batch, action_dim), jnp.float32)
    params = init_params(k_param, input_dim, action_dim, hidden, num_nets)
    fused = fuse_params(params, input_dim)

    q = q_forward(obs, act, fused)
    jax.block_until_ready(q)

    ref = _reference(obs, act, params)
    assert q.shape == (batch, num_nets)
    assert jnp.allclose(q, ref, atol=1e-4, rtol=1e-4), float(jnp.max(jnp.abs(q - ref)))

    print("KERNEL_OK")
</pallas_src>

<mosaic_0001>
module attributes {stable_mosaic.version = 11 : i64} {
  func.func @_qnet_kernel(%arg0: i32, %arg1: memref<8x16xf32, #tpu.memory_space<vmem>>, %arg2: memref<8x6xf32, #tpu.memory_space<vmem>>, %arg3: memref<22x128xf32, #tpu.memory_space<vmem>>, %arg4: memref<1x128xf32, #tpu.memory_space<vmem>>, %arg5: memref<128x2xf32, #tpu.memory_space<vmem>>, %arg6: memref<1x2xf32, #tpu.memory_space<vmem>>, %arg7: memref<8x2xf32, #tpu.memory_space<vmem>>) attributes {dimension_semantics = [#tpu.dimension_semantics<parallel>], iteration_bounds = array<i64: 1>, scalar_prefetch = 0 : i64, scratch_operands = 0 : i64, tpu.core_type = #tpu.core_type<tc>, window_params = [{transform_indices = @transform_0, window_bounds = array<i64: 8, 16>}, {transform_indices = @transform_1, window_bounds = array<i64: 8, 6>}, {pipeline_mode = #tpu.pipeline_mode<synchronous>, transform_indices = @transform_2, window_bounds = array<i64: 22, 128>}, {pipeline_mode = #tpu.pipeline_mode<synchronous>, transform_indices = @transform_3, window_bounds = array<i64: 1, 128>}, {pipeline_mode = #tpu.pipeline_mode<synchronous>, transform_indices = @transform_4, window_bounds = array<i64: 128, 2>}, {pipeline_mode = #tpu.pipeline_mode<synchronous>, transform_indices = @transform_5, window_bounds = array<i64: 1, 2>}, {transform_indices = @transform_6, window_bounds = array<i64: 8, 2>}]} {
    %c0 = arith.constant 0 : index
    %c0_0 = arith.constant 0 : index
    %0 = vector.load %arg1[%c0, %c0_0] : memref<8x16xf32, #tpu.memory_space<vmem>>, vector<8x16xf32>
    %c0_1 = arith.constant 0 : index
    %c0_2 = arith.constant 0 : index
    %1 = vector.load %arg3[%c0_1, %c0_2] : memref<22x128xf32, #tpu.memory_space<vmem>>, vector<16x128xf32>
    %cst = arith.constant dense<0.000000e+00> : vector<8x128xf32>
    %2 = tpu.matmul %0, %1, %cst {dimension_numbers = #tpu.dot_dimension_numbers<[1], [0], [0], [1], [0, 0, 1, 1], [], []>} : vector<8x16xf32>, vector<16x128xf32>, vector<8x128xf32> -> vector<8x128xf32>
    %c0_3 = arith.constant 0 : index
    %c0_4 = arith.constant 0 : index
    %3 = vector.load %arg2[%c0_3, %c0_4] : memref<8x6xf32, #tpu.memory_space<vmem>>, vector<8x6xf32>
    %c16 = arith.constant 16 : index
    %c0_5 = arith.constant 0 : index
    %4 = vector.load %arg3[%c16, %c0_5] : memref<22x128xf32, #tpu.memory_space<vmem>>, vector<6x128xf32>
    %cst_6 = arith.constant dense<0.000000e+00> : vector<8x128xf32>
    %5 = tpu.matmul %3, %4, %cst_6 {dimension_numbers = #tpu.dot_dimension_numbers<[1], [0], [0], [1], [0, 0, 1, 1], [], []>} : vector<8x6xf32>, vector<6x128xf32>, vector<8x128xf32> -> vector<8x128xf32>
    %6 = arith.addf %2, %5 : vector<8x128xf32>
    %c0_7 = arith.constant 0 : index
    %c0_8 = arith.constant 0 : index
    %7 = vector.load %arg4[%c0_7, %c0_8] : memref<1x128xf32, #tpu.memory_space<vmem>>, vector<1x128xf32>
    %8 = vector.broadcast %7 : vector<1x128xf32> to vector<8x128xf32>
    %9 = arith.addf %6, %8 : vector<8x128xf32>
    %cst_9 = arith.constant 0.000000e+00 : f32
    %10 = vector.broadcast %cst_9 : f32 to vector<8x128xf32>
    %11 = arith.maximumf %9, %10 : vector<8x128xf32>
    %c0_10 = arith.constant 0 : index
    %c0_11 = arith.constant 0 : index
    %12 = vector.load %arg5[%c0_10, %c0_11] : memref<128x2xf32, #tpu.memory_space<vmem>>, vector<128x2xf32>
    %cst_12 = arith.constant dense<0.000000e+00> : vector<8x2xf32>
    %13 = tpu.matmul %11, %12, %cst_12 {dimension_numbers = #tpu.dot_dimension_numbers<[1], [0], [0], [1], [0, 0, 1, 1], [], []>} : vector<8x128xf32>, vector<128x2xf32>, vector<8x2xf32> -> vector<8x2xf32>
    %c0_13 = arith.constant 0 : index
    %c0_14 = arith.constant 0 : index
    %14 = vector.load %arg6[%c0_13, %c0_14] : memref<1x2xf32, #tpu.memory_space<vmem>>, vector<1x2xf32>
    %15 = vector.broadcast %14 : vector<1x2xf32> to vector<8x2xf32>
    %16 = arith.addf %13, %15 : vector<8x2xf32>
    %c0_15 = arith.constant 0 : index
    %c0_16 = arith.constant 0 : index
    %17 = vector.load %arg7[%c0_15, %c0_16] : memref<8x2xf32, #tpu.memory_space<vmem>>, vector<8x2xf32>
    tpu.vector_store %arg7[%c0_15, %c0_16], %16 {strides = array<i32>} : memref<8x2xf32, #tpu.memory_space<vmem>>, vector<8x2xf32>,
    return
  }
  func.func @transform_0(%arg0: i32) -> (i32, i32) {
    %c0_i32 = arith.constant 0 : i32
    %c0_i32_0 = arith.constant 0 : i32
    return %arg0, %c0_i32 : i32, i32
  }
  func.func @transform_1(%arg0: i32) -> (i32, i32) {
    %c0_i32 = arith.constant 0 : i32
    %c0_i32_0 = arith.constant 0 : i32
    return %arg0, %c0_i32 : i32, i32
  }
  func.func @transform_2(%arg0: i32) -> (i32, i32) {
    %c0_i32 = arith.constant 0 : i32
    %c0_i32_0 = arith.constant 0 : i32
    %c0_i32_1 = arith.constant 0 : i32
    return %c0_i32, %c0_i32_0 : i32, i32
  }
  func.func @transform_3(%arg0: i32) -> (i32, i32) {
    %c0_i32 = arith.constant 0 : i32
    %c0_i32_0 = arith.constant 0 : i32
    %c0_i32_1 = arith.constant 0 : i32
    return %c0_i32, %c0_i32_0 : i32, i32
  }
  func.func @transform_4(%arg0: i32) -> (i32, i32) {
    %c0_i32 = arith.constant 0 : i32
    %c0_i32_0 = arith.constant 0 : i32
    %c0_i32_1 = arith.constant 0 : i32
    return %c0_i32, %c0_i32_0 : i32, i32
  }
  func.func @transform_5(%arg0: i32) -> (i32, i32) {
    %c0_i32 = arith.constant 0 : i32
    %c0_i32_0 = arith.constant 0 : i32
    %c0_i32_1 = arith.constant 0 : i32
    return %c0_i32, %c0_i32_0 : i32, i32
  }
  func.func @transform_6(%arg0: i32) -> (i32, i32) {
    %c0_i32 = arith.constant 0 : i32
    %c0_i32_0 = arith.constant 0 : i32
    return %arg0, %c0_i32 : i32, i32
  }
}

</mosaic_0001>

<llo_original>
// kernel: _q_forward_impl.1
$region0: #{_q_forward_impl.1}
  #allocation0 [shape = 'u32[]', space=smem, size = 0x4, offset = 0x4, fixed_abs, tag = 'smem constant byte address 0x4 - core index']
  #allocation1 [shape = 'u32[144,128]{1,0:T(1,128)}', space=vmem, size = 0x12000, scoped, tag = 'internal scratch']
  %s0 = inlined_call_operand.vmem [shape: f32[4,16], index: 0, kind: input, shape index: {}]
  %s1 = inlined_call_operand.vmem [shape: f32[4,6], index: 1, kind: input, shape index: {}]
  %s2 = inlined_call_operand.vmem [shape: f32[22,128], index: 2, kind: input, shape index: {}]
  %s3 = inlined_call_operand.vmem [shape: f32[1,128], index: 3, kind: input, shape index: {}]
  %s4 = inlined_call_operand.vmem [shape: f32[128,2], index: 4, kind: input, shape index: {}]
  %s5 = inlined_call_operand.vmem [shape: f32[1,2], index: 5, kind: input, shape index: {}]
  %s6 = inlined_call_operand.vmem [shape: f32[4,2], index: 6, kind: output, shape index: {}]
  %s7 = sld [smem:[#allocation0]]
  $region64: #{_q_forward_impl.1} parent=0
    _
  %s9 = ssub.s32 1, %s7
  %s10 = scalar_select 0, %s9, %s7
  $region1: #{_q_forward_impl.1} parent=0
    #allocation2 [shape = 'u8[4096]{0}', space=vmem, size = 0x1000, scoped, tag = 'output window, operand 0, single buffered']
    // Predicated region
    $region2: #{_q_forward_impl.1} parent=1 // pred_check
      _
    $region3: #{_q_forward_impl.1} parent=1 // pred_check_branch
      %12 = sbr.rel (0) target = $region5
    $region4: #{_q_forward_impl.1} parent=1 // pred_region
      _
    $region5: #{_q_forward_impl.1} parent=1 // pred_fallthru
      _
    // Predicated region
    $region6: #{_q_forward_impl.1} parent=1 // pred_check
      _
    $region7: #{_q_forward_impl.1} parent=1 // pred_check_branch
      %14 = sbr.rel (0) target = $region9
    $region8: #{_q_forward_impl.1} parent=1 // pred_region
      _
    $region9: #{_q_forward_impl.1} parent=1 // pred_fallthru
      _
    // Predicated region
    $region10: #{_q_forward_impl.1} parent=1 // pred_check
      _
    $region11: #{_q_forward_impl.1} parent=1 // pred_check_branch
      %16 = sbr.rel (0) target = $region13
    $region12: #{_q_forward_impl.1} parent=1 // pred_region
      _
    $region13: #{_q_forward_impl.1} parent=1 // pred_fallthru
      _
    // Predicated region
    $region14: #{_q_forward_impl.1} parent=1 // pred_check
      _
    $region15: #{_q_forward_impl.1} parent=1 // pred_check_branch
      %18 = sbr.rel (0) target = $region17
    $region16: #{_q_forward_impl.1} parent=1 // pred_region
      _
    $region17: #{_q_forward_impl.1} parent=1 // pred_fallthru
      _
    // Predicated region
    $region18: #{_q_forward_impl.1} parent=1 // pred_check
      _
    $region19: #{_q_forward_impl.1} parent=1 // pred_check_branch
      %20 = sbr.rel (0) target = $region21
    $region20: #{_q_forward_impl.1} parent=1 // pred_region
      _
    $region21: #{_q_forward_impl.1} parent=1 // pred_fallthru
      _
    // Predicated region
    $region22: #{_q_forward_impl.1} parent=1 // pred_check
      _
    $region23: #{_q_forward_impl.1} parent=1 // pred_check_branch
      %22 = sbr.rel (0) target = $region25
    $region24: #{_q_forward_impl.1} parent=1 // pred_region
      _
    $region25: #{_q_forward_impl.1} parent=1 // pred_fallthru
      _
    %v23 = vld [vmem:[%s0] sm:$0xff]
    %v24 = vld [vmem:[%s2] sm:$0xff]
    %v25 = vld [vmem:[%s2 + $0x8] sm:$0xff]
    %v26 = vld [vmem:[%s1] sm:$0xff]
    %v27 = vld [vmem:[%s2 + $0x10] sm:$0x3f]
    %vm28 = vcmask 48128
    %v30 = vsel %vm28, %v26, 0
    %vm32 = vcmask 1045504
    %v34 = vsel %vm32, %v27, 0
    %36 = vmatprep.subr.mxu0 0.0
    %37 = vmatpush1.msra.mxu0 %v34
    %38 = vmatprep.subr.mxu0 0.0
    %39 = vmatpush1.msra.mxu0 0.0
    %40 = vmatprep.subr.mxu0 0.0
    %41 = vmatpush1.msra.mxu0 0.0
    %42 = vmatprep.subr.mxu0 0.0
    %43 = vmatpush1.msra.mxu0 0.0
    %44 = vmatprep.subr.mxu0 0.0
    %45 = vmatpush1.msra.mxu0 0.0
    %46 = vmatprep.subr.mxu0 0.0
    %47 = vmatpush1.msra.mxu0 0.0
    %48 = vmatprep.subr.mxu0 0.0
    %49 = vmatpush1.msra.mxu0 0.0
    %50 = vmatprep.subr.mxu0 0.0
    %51 = vmatpush1.msra.mxu0 0.0
    %52 = vmatprep.subr.mxu0 0.0
    %53 = vmatpush1.msra.mxu0 0.0
    %54 = vmatprep.subr.mxu0 0.0
    %55 = vmatpush1.msra.mxu0 0.0
    %56 = vmatprep.subr.mxu0 0.0
    %57 = vmatpush1.msra.mxu0 0.0
    %58 = vmatprep.subr.mxu0 0.0
    %59 = vmatpush1.msra.mxu0 0.0
    %60 = vmatprep.subr.mxu0 0.0
    %61 = vmatpush1.msra.mxu0 0.0
    %62 = vmatprep.subr.mxu0 0.0
    %63 = vmatpush1.msra.mxu0 0.0
    %64 = vmatprep.subr.mxu0 0.0
    %65 = vmatpush1.msra.mxu0 0.0
    %66 = vmatprep.subr.mxu0 0.0
    %67 = vmatpush1.msra.mxu0 0.0
    %68 = vmatprep.subr.mxu0 0.0
    %69 = vmatpush1.msra.mxu0 0.0
    %70 = vmatprep.subr.mxu0 0.0
    %71 = vmatpush1.msra.mxu0 0.0
    %72 = vmatprep.subr.mxu0 0.0
    %73 = vmatpush1.msra.mxu0 0.0
    %74 = vmatprep.subr.mxu0 0.0
    %75 = vmatpush1.msra.mxu0 0.0
    %76 = vmatprep.subr.mxu0 0.0
    %77 = vmatpush1.msra.mxu0 0.0
    %78 = vmatprep.subr.mxu0 0.0
    %79 = vmatpush1.msra.mxu0 0.0
    %80 = vmatprep.subr.mxu0 0.0
    %81 = vmatpush1.msra.mxu0 0.0
    %82 = vmatprep.subr.mxu0 0.0
    %83 = vmatpush1.msra.mxu0 0.0
    %84 = vmatprep.subr.mxu0 0.0
    %85 = vmatpush1.msra.mxu0 0.0
    %86 = vmatprep.subr.mxu0 0.0
    %87 = vmatpush1.msra.mxu0 0.0
    %88 = vmatprep.subr.mxu0 0.0
    %89 = vmatpush1.msra.mxu0 0.0
    %90 = vmatprep.subr.mxu0 0.0
    %91 = vmatpush1.msra.mxu0 0.0
    %92 = vmatprep.subr.mxu0 0.0
    %93 = vmatpush1.msra.mxu0 0.0
    %94 = vmatprep.subr.mxu0 0.0
    %95 = vmatpush1.msra.mxu0 0.0
    %96 = vmatprep.subr.mxu0 0.0
    %97 = vmatpush1.msra.mxu0 0.0
    %98 = vmatprep.subr.mxu0 0.0
    %99 = vmatpush1.msra.mxu0 0.0
    %100 = vmatprep.mubr.f32.mxu0 0.0
    %101 = vmatmul.mubr.f32.gmra.mrb[0].mxu0 %v30
    %v102 = vpop.f32.mrb[0].mxu0
    %v103 = vadd.f32 0.0, %v102
    %v104 = vpop.f32.mrb[0].mxu0
    %105 = vdwg.mxu0
    %vm106 = vcmask 130048
    %v108 = vsel %vm106, %v23, 0
    %110 = vmatprep.subr.mxu0 0.0
    %111 = vmatpush1.msra.mxu0 %v24
    %112 = vmatprep.subr.mxu0 0.0
    %113 = vmatpush1.msra.mxu0 %v25
    %114 = vmatprep.subr.mxu0 0.0
    %115 = vmatpush1.msra.mxu0 0.0
    %116 = vmatprep.subr.mxu0 0.0
    %117 = vmatpush1.msra.mxu0 0.0
    %118 = vmatprep.subr.mxu0 0.0
    %119 = vmatpush1.msra.mxu0 0.0
    %120 = vmatprep.subr.mxu0 0.0
    %121 = vmatpush1.msra.mxu0 0.0
    %122 = vmatprep.subr.mxu0 0.0
    %123 = vmatpush1.msra.mxu0 0.0
    %124 = vmatprep.subr.mxu0 0.0
    %125 = vmatpush1.msra.mxu0 0.0
    %126 = vmatprep.subr.mxu0 0.0
    %127 = vmatpush1.msra.mxu0 0.0
    %128 = vmatprep.subr.mxu0 0.0
    %129 = vmatpush1.msra.mxu0 0.0
    %130 = vmatprep.subr.mxu0 0.0
    %131 = vmatpush1.msra.mxu0 0.0
    %132 = vmatprep.subr.mxu0 0.0
    %133 = vmatpush1.msra.mxu0 0.0
    %134 = vmatprep.subr.mxu0 0.0
    %135 = vmatpush1.msra.mxu0 0.0
    %136 = vmatprep.subr.mxu0 0.0
    %137 = vmatpush1.msra.mxu0 0.0
    %138 = vmatprep.subr.mxu0 0.0
    %139 = vmatpush1.msra.mxu0 0.0
    %140 = vmatprep.subr.mxu0 0.0
    %141 = vmatpush1.msra.mxu0 0.0
    %142 = vmatprep.subr.mxu0 0.0
    %143 = vmatpush1.msra.mxu0 0.0
    %144 = vmatprep.subr.mxu0 0.0
    %145 = vmatpush1.msra.mxu0 0.0
    %146 = vmatprep.subr.mxu0 0.0
    %147 = vmatpush1.msra.mxu0 0.0
    %148 = vmatprep.subr.mxu0 0.0
    %149 = vmatpush1.msra.mxu0 0.0
    %150 = vmatprep.subr.mxu0 0.0
    %151 = vmatpush1.msra.mxu0 0.0
    %152 = vmatprep.subr.mxu0 0.0
    %153 = vmatpush1.msra.mxu0 0.0
    %154 = vmatprep.subr.mxu0 0.0
    %155 = vmatpush1.msra.mxu0 0.0
    %156 = vmatprep.subr.mxu0 0.0
    %157 = vmatpush1.msra.mxu0 0.0
    %158 = vmatprep.subr.mxu0 0.0
    %159 = vmatpush1.msra.mxu0 0.0
    %160 = vmatprep.subr.mxu0 0.0
    %161 = vmatpush1.msra.mxu0 0.0
    %162 = vmatprep.subr.mxu0 0.0
    %163 = vmatpush1.msra.mxu0 0.0
    %164 = vmatprep.subr.mxu0 0.0
    %165 = vmatpush1.msra.mxu0 0.0
    %166 = vmatprep.subr.mxu0 0.0
    %167 = vmatpush1.msra.mxu0 0.0
    %168 = vmatprep.subr.mxu0 0.0
    %169 = vmatpush1.msra.mxu0 0.0
    %170 = vmatprep.subr.mxu0 0.0
    %171 = vmatpush1.msra.mxu0 0.0
    %172 = vmatprep.subr.mxu0 0.0
    %173 = vmatpush1.msra.mxu0 0.0
    %174 = vmatprep.mubr.f32.mxu0 0.0
    %175 = vmatmul.mubr.f32.gmra.mrb[0].mxu0 %v108
    %v176 = vpop.f32.mrb[0].mxu0
    %v177 = vadd.f32 %v103, %v176
    %v178 = vpop.f32.mrb[0].mxu0
    %179 = vdwg.mxu0
    %v180 = vld [vmem:[%s3] sm:$0x1]
    %v182 = vlaneseq
    %v183 = vshrl.u32 %v182, 7
    %v184 = vsub.s32 0, %v183
    %v185 = vrot.slane %v180, %v184
    %v187 = vadd.f32 %v177, %v185
    %v188 = vmax.f32 %v187, 0.0
    %v189 = vld [vmem:[%s4] sm:$0xff]
    %v190 = vld [vmem:[%s4 + $0x8] sm:$0xff]
    %v191 = vld [vmem:[%s4 + $0x10] sm:$0xff]
    %v192 = vld [vmem:[%s4 + $0x18] sm:$0xff]
    %v193 = vld [vmem:[%s4 + $0x20] sm:$0xff]
    %v194 = vld [vmem:[%s4 + $0x28] sm:$0xff]
    %v195 = vld [vmem:[%s4 + $0x30] sm:$0xff]
    %v196 = vld [vmem:[%s4 + $0x38] sm:$0xff]
    %v197 = vld [vmem:[%s4 + $0x40] sm:$0xff]
    %v198 = vld [vmem:[%s4 + $0x48] sm:$0xff]
    %v199 = vld [vmem:[%s4 + $0x50] sm:$0xff]
    %v200 = vld [vmem:[%s4 + $0x58] sm:$0xff]
    %v201 = vld [vmem:[%s4 + $0x60] sm:$0xff]
    %v202 = vld [vmem:[%s4 + $0x68] sm:$0xff]
    %v203 = vld [vmem:[%s4 + $0x70] sm:$0xff]
    %v204 = vld [vmem:[%s4 + $0x78] sm:$0xff]
    %v205 = vld [vmem:[%s5] sm:$0x1]
    %v207 = vlaneseq
    %v208 = vshrl.u32 %v207, 7
    %v209 = vsub.s32 0, %v208
    %v210 = vrot.slane %v205, %v209
    %212 = vmatprep.subr.mxu0 0.0
    %213 = vmatpush1.msra.mxu0 %v189
    %214 = vmatprep.subr.mxu0 0.0
    %215 = vmatpush1.msra.mxu0 %v190
    %216 = vmatprep.subr.mxu0 0.0
    %217 = vmatpush1.msra.mxu0 %v191
    %218 = vmatprep.subr.mxu0 0.0
    %219 = vmatpush1.msra.mxu0 %v192
    %220 = vmatprep.subr.mxu0 0.0
    %221 = vmatpush1.msra.mxu0 %v193
    %222 = vmatprep.subr.mxu0 0.0
    %223 = vmatpush1.msra.mxu0 %v194
    %224 = vmatprep.subr.mxu0 0.0
    %225 = vmatpush1.msra.mxu0 %v195
    %226 = vmatprep.subr.mxu0 0.0
    %227 = vmatpush1.msra.mxu0 %v196
    %228 = vmatprep.subr.mxu0 0.0
    %229 = vmatpush1.msra.mxu0 %v197
    %230 = vmatprep.subr.mxu0 0.0
    %231 = vmatpush1.msra.mxu0 %v198
    %232 = vmatprep.subr.mxu0 0.0
    %233 = vmatpush1.msra.mxu0 %v199
    %234 = vmatprep.subr.mxu0 0.0
    %235 = vmatpush1.msra.mxu0 %v200
    %236 = vmatprep.subr.mxu0 0.0
    %237 = vmatpush1.msra.mxu0 %v201
    %238 = vmatprep.subr.mxu0 0.0
    %239 = vmatpush1.msra.mxu0 %v202
    %240 = vmatprep.subr.mxu0 0.0
    %241 = vmatpush1.msra.mxu0 %v203
    %242 = vmatprep.subr.mxu0 0.0
    %243 = vmatpush1.msra.mxu0 %v204
    %244 = vmatprep.subr.mxu0 0.0
    %245 = vmatpush1.msra.mxu0 0.0
    %246 = vmatprep.subr.mxu0 0.0
    %247 = vmatpush1.msra.mxu0 0.0
    %248 = vmatprep.subr.mxu0 0.0
    %249 = vmatpush1.msra.mxu0 0.0
    %250 = vmatprep.subr.mxu0 0.0
    %251 = vmatpush1.msra.mxu0 0.0
    %252 = vmatprep.subr.mxu0 0.0
    %253 = vmatpush1.msra.mxu0 0.0
    %254 = vmatprep.subr.mxu0 0.0
    %255 = vmatpush1.msra.mxu0 0.0
    %256 = vmatprep.subr.mxu0 0.0
    %257 = vmatpush1.msra.mxu0 0.0
    %258 = vmatprep.subr.mxu0 0.0
    %259 = vmatpush1.msra.mxu0 0.0
    %260 = vmatprep.subr.mxu0 0.0
    %261 = vmatpush1.msra.mxu0 0.0
    %262 = vmatprep.subr.mxu0 0.0
    %263 = vmatpush1.msra.mxu0 0.0
    %264 = vmatprep.subr.mxu0 0.0
    %265 = vmatpush1.msra.mxu0 0.0
    %266 = vmatprep.subr.mxu0 0.0
    %267 = vmatpush1.msra.mxu0 0.0
    %268 = vmatprep.subr.mxu0 0.0
    %269 = vmatpush1.msra.mxu0 0.0
    %270 = vmatprep.subr.mxu0 0.0
    %271 = vmatpush1.msra.mxu0 0.0
    %272 = vmatprep.subr.mxu0 0.0
    %273 = vmatpush1.msra.mxu0 0.0
    %274 = vmatprep.subr.mxu0 0.0
    %275 = vmatpush1.msra.mxu0 0.0
    %276 = vmatprep.mubr.f32.mxu0 0.0
    %277 = vmatmul.mubr.f32.gmra.mrb[0].mxu0 %v188
    %v278 = vpop.f32.mrb[0].mxu0
    %v279 = vadd.f32 %v210, %v278
    %v280 = vpop.f32.mrb[0].mxu0
    %281 = vdwg.mxu0
    %vm282 = vcmask 15360
    %283 = vst.msk [vmem:[#allocation2] sm:$0xff] %vm282, %v279
    // Predicated region
    $region26: #{_q_forward_impl.1} parent=1 // pred_check
      _
    $region27: #{_q_forward_impl.1} parent=1 // pred_check_branch
      %285 = sbr.rel (0) target = $region29
    $region28: #{_q_forward_impl.1} parent=1 // pred_region
      // Predicated region
      $region30: #{_q_forward_impl.1} parent=28 // pred_check
        _
      $region31: #{_q_forward_impl.1} parent=28 // pred_check_branch
        %287 = sbr.rel (0) target = $region33
      $region32: #{_q_forward_impl.1} parent=28 // pred_region
        // Predicated region
        $region34: #{_q_forward_impl.1} parent=32 // pred_check
          _
        $region35: #{_q_forward_impl.1} parent=32 // pred_check_branch
          %289 = sbr.rel target = $region37
        $region36: #{_q_forward_impl.1} parent=32 // pred_region
          // Predicated region
          $region49: #{_q_forward_impl.1} parent=36 // pred_check
            _
          $region50: #{_q_forward_impl.1} parent=36 // pred_check_branch
            %304 = sbr.rel (0) target = $region52
          $region51: #{_q_forward_impl.1} parent=36 // pred_region
            loop: start=0, step=1, limit=1
            $region53: #{_q_forward_impl.1} parent=51 // loop_pre_header
              _
            $region54: #{_q_forward_impl.1} parent=51 // loop_header
              %s307 = sphi 0, %s311
              %p308 = scmp.ge.s32.totalorder %s307, 1
              %s312 = sphi [#allocation2], [#allocation2]
              %s313 = sphi %s6, %s6
            $region55: #{_q_forward_impl.1} parent=51 // loop_header_branch
              %310 = sbr.rel (%p308) target = $region59
            $region56: #{_q_forward_impl.1} parent=51 // loop_body
              %v314 = vld [vmem:[%s312] sm:$0xf]
              %315 = vst [vmem:[%s313] sm:$0xf] %v314
            $region57: #{_q_forward_impl.1} parent=51 // loop_footer
              %s311 = sadd.s32 1, %s307
            $region58: #{_q_forward_impl.1} parent=51 // loop_footer_branch
              %306 = sbr.rel target = $region54
            $region59: #{_q_forward_impl.1} parent=51 // loop_exit
              _
          $region52: #{_q_forward_impl.1} parent=36 // pred_fallthru
            _
        $region37: #{_q_forward_impl.1} parent=32 // pred_fallthru
          _
        // Predicated region
        $region38: #{_q_forward_impl.1} parent=32 // pred_check
          _
        $region39: #{_q_forward_impl.1} parent=32 // pred_check_branch
          %291 = sbr.rel (0) target = $region41
        $region40: #{_q_forward_impl.1} parent=32 // pred_region
          loop: start=0, step=1, limit=1
          $region42: #{_q_forward_impl.1} parent=40 // loop_pre_header
            _
          $region43: #{_q_forward_impl.1} parent=40 // loop_header
            %s294 = sphi 0, %s298
            %p295 = scmp.ge.s32.totalorder %s294, 1
            %s299 = sphi [#allocation2], [#allocation2]
            %s300 = sphi %s6, %s6
          $region44: #{_q_forward_impl.1} parent=40 // loop_header_branch
            %297 = sbr.rel (%p295) target = $region48
          $region45: #{_q_forward_impl.1} parent=40 // loop_body
            %v301 = vld [vmem:[%s299] sm:$0xf]
            %302 = vst [vmem:[%s300] sm:$0xf] %v301
          $region46: #{_q_forward_impl.1} parent=40 // loop_footer
            %s298 = sadd.s32 1, %s294
          $region47: #{_q_forward_impl.1} parent=40 // loop_footer_branch
            %293 = sbr.rel target = $region43
          $region48: #{_q_forward_impl.1} parent=40 // loop_exit
            _
        $region41: #{_q_forward_impl.1} parent=32 // pred_fallthru
          _
      $region33: #{_q_forward_impl.1} parent=28 // pred_fallthru
        _
      %316 = vnop
    $region29: #{_q_forward_impl.1} parent=1 // pred_fallthru
      _
    // Predicated region
    $region60: #{_q_forward_impl.1} parent=1 // pred_check
      _
    $region61: #{_q_forward_impl.1} parent=1 // pred_check_branch
      %318 = sbr.rel (0) target = $region63
    $region62: #{_q_forward_impl.1} parent=1 // pred_region
      _
    $region63: #{_q_forward_impl.1} parent=1 // pred_fallthru
      _

</llo_original>
